<compile_context>
chip_gen: v7x
topology: tpu7x:2x2x1
jax: 0.10.0
libtpu: 0.0.40
codegen_flags: <defaults>
</compile_context>

<pallas_src>
import numpy as np
import jax
import jax.numpy as jnp
from jax.experimental import pallas as pl
from jax.experimental.pallas import tpu as pltpu

_QUALITY = [0.6, 0.5, 0.4, 0.3, 0.25]


# -----------------------------------------------------------------------------
# Host-side deterministic setup: PIL BOX resampling matrices (pure function of
# the image size and severity).
# -----------------------------------------------------------------------------
def _pil_box_resize_matrix(in_size: int, out_size: int) -> np.ndarray:
    """(in_size, out_size) matrix M such that PIL BOX resize along an axis is x @ M."""
    scale = in_size / out_size
    filterscale = max(scale, 1.0)
    support = 0.5 * filterscale
    mat = np.zeros((in_size, out_size), dtype=np.float64)
    for o in range(out_size):
        center = (o + 0.5) * scale
        xmin = max(int(center - support + 0.5), 0)
        xmax = min(int(center + support + 0.5), in_size)
        taps = np.array(
            [1.0 if -0.5 < (x - center + 0.5) / filterscale <= 0.5 else 0.0
             for x in range(xmin, xmax)],
            dtype=np.float64,
        )
        s = taps.sum()
        if s > 0.0:
            mat[xmin:xmax, o] = taps / s
    return mat.astype(np.float32)


def _box_down_and_nearest_up(full: int, small: int):
    """Box-average downsample matrix (full, small) and nearest-up source idx (full,)."""
    down = _pil_box_resize_matrix(full, small)      # box average (weights 1/k)
    up = _pil_box_resize_matrix(small, full)        # 0/1 selection (scale < 1)
    src = np.argmax(up, axis=0).astype(np.int64)    # nearest source index per output
    return down, src


def _bf16_exact(mat: np.ndarray) -> bool:
    """True if every entry of `mat` is exactly representable in bfloat16."""
    rt = np.asarray(jax.device_get(jnp.asarray(mat).astype(jnp.bfloat16).astype(jnp.float32)))
    return bool(np.array_equal(rt, np.asarray(mat, dtype=np.float32)))


def _choose_plane_block(q: int, h: int, w: int):
    """Planes per grid step: multi-MiB streamed blocks, VMEM-safe, >=2 grid steps."""
    plane_bytes = 4 * h * w
    try:
        vmem_cap = int(pltpu.get_tpu_info().vmem_capacity_bytes)
    except Exception:               # conservative fallback: v7x has 64 MiB / TC
        vmem_cap = 64 << 20
    # ~8 live f32 copies of the block: in/out double-buffered (4x) plus the
    # u8 / per-pass / transposed intermediates (~4x).
    budget = min(vmem_cap // 3, 20 << 20)
    p_vmem = max(1, budget // (8 * plane_bytes))
    # HBM-roofline sweet spot: ~4 MiB of streamed input per grid step.
    p_bw = max(1, (4 << 20) // plane_bytes)
    p = max(1, min(p_vmem, p_bw, q))
    # Keep >= 2 grid steps so the "parallel" axis can shard across the two
    # TensorCores of a v7x chip (no effect on single-TC v5e/v6e).
    if q >= 2:
        p = min(p, pl.cdiv(q, 2))
    return p, vmem_cap


# -----------------------------------------------------------------------------
# Pallas kernel: pixelate a block of P image planes with two tall MXU matmuls.
# -----------------------------------------------------------------------------
def _pixelate_kernel(x_ref, mw_ref, mh_ref, o_ref):
    # x_ref : (P, H, W) input planes      mw_ref : (W, W) fused col box-down + nearest-up
    # o_ref : (P, H, W) output planes     mh_ref : (H, H) fused row box-down + nearest-up
    p, h, w = x_ref.shape
    cdt = mw_ref.dtype            # bf16 when the weights are bf16-exact, else f32

    # ToPILImage: u8 = floor(clip(x, 0, 1) * 255)   (integer-valued, cdt-exact)
    u8 = jnp.floor(jnp.clip(x_ref[...].astype(jnp.float32), 0.0, 1.0) * 255.0)

    # Horizontal pass: ONE tall (P*H, W) @ (W, W) matmul; the shared weight
    # matrix is the held MXU RHS (no broadcast / per-plane weight re-push).
    y = jnp.dot(u8.reshape(p * h, w).astype(cdt), mw_ref[...],
                preferred_element_type=jnp.float32)
    # PIL per-pass uint8 round-half-up; convex box weights keep it in [0, 255],
    # so no clip is needed.
    y = jnp.floor(y + 0.5)

    # Vertical pass: transpose the last two dims (XLU slot has slack here) so
    # the shared (H, H) matrix is again the held RHS of one tall matmul.
    yt = jnp.transpose(y.astype(cdt).reshape(p, h, w), (0, 2, 1)).reshape(p * w, h)
    z = jnp.dot(yt, mh_ref[...], preferred_element_type=jnp.float32)
    z = jnp.floor(z + 0.5)
    z = jnp.transpose(z.reshape(p, w, h), (0, 2, 1))        # back to (P, H, W)

    # ToTensor: out = u8 / 255
    o_ref[...] = (z * (1.0 / 255.0)).astype(o_ref.dtype)


def pixelate(img: jnp.ndarray, severity: int) -> jnp.ndarray:
    """Equivalent of Pixelate(severity).forward(img); img is CHW (or NCHW) in [0, 1]."""
    if not isinstance(severity, int):
        raise TypeError("Severity must be an integer.")
    if not 0 <= severity <= 5:
        raise ValueError("Severity must be between 0 and 5.")
    if severity == 0:
        return img

    no_batch = img.ndim == 3
    if no_batch:
        img = img[None]
    n, c, h, w = img.shape

    quality = _QUALITY[severity - 1]
    h2, w2 = int(h * quality), int(w * quality)
    if h2 < 1 or w2 < 1:
        raise ValueError("Image too small for this severity.")

    # Static per-axis resampling operators (deterministic from shapes/severity).
    dw, src_c = _box_down_and_nearest_up(w, w2)     # (W, w2), (W,)
    dh, src_r = _box_down_and_nearest_up(h, h2)     # (H, h2), (H,)
    mw_np = dw[:, src_c]                            # (W, W)  cols: box-down + nearest-up
    mh_np = dh[:, src_r]                            # (H, H)  rows: box-down + nearest-up

    # bf16 matmuls are lossless only when the box weights are bf16-exact
    # (e.g. powers-of-two tap counts: quality 0.5 / 0.25); gate on that.
    compute_dtype = jnp.bfloat16 if (_bf16_exact(mw_np) and _bf16_exact(mh_np)) else jnp.float32
    mw = jnp.asarray(mw_np, dtype=compute_dtype)
    mh = jnp.asarray(mh_np, dtype=compute_dtype)

    q = n * c
    p, vmem_cap = _choose_plane_block(q, h, w)
    grid = pl.cdiv(q, p)                            # ragged tail handled by Pallas padding

    # Explicit scoped-VMEM limit with headroom over the estimated footprint.
    footprint = 12 * p * h * w * 4 + 4 * (h * h + w * w) * 4
    vmem_limit = int(min(vmem_cap - (4 << 20), max(footprint, 16 << 20)))

    x = img.reshape(q, h, w)

    out = pl.pallas_call(
        _pixelate_kernel,
        out_shape=jax.ShapeDtypeStruct((q, h, w), img.dtype),
        grid_spec=pltpu.PrefetchScalarGridSpec(
            num_scalar_prefetch=0,
            grid=(grid,),
            in_specs=[
                pl.BlockSpec((p, h, w), lambda i: (i, 0, 0)),   # image planes
                pl.BlockSpec((w, w), lambda i: (0, 0)),         # Mw (VMEM resident)
                pl.BlockSpec((h, h), lambda i: (0, 0)),         # Mh (VMEM resident)
            ],
            out_specs=pl.BlockSpec((p, h, w), lambda i: (i, 0, 0)),
        ),
        compiler_params=pltpu.CompilerParams(
            dimension_semantics=("parallel",),
            vmem_limit_bytes=vmem_limit,
        ),
    )(x, mw, mh)

    out = out.reshape(n, c, h, w)
    if no_batch:
        out = out[0]
    return out


# -----------------------------------------------------------------------------
# Plain numpy reference following PIL's exact pass order (H-down, round, V-down,
# round, nearest up) for a correctness check.
# -----------------------------------------------------------------------------
def _pixelate_reference(img: np.ndarray, severity: int) -> np.ndarray:
    img = np.asarray(img, dtype=np.float32)
    shape = img.shape
    h, w = shape[-2], shape[-1]
    quality = _QUALITY[severity - 1]
    h2, w2 = int(h * quality), int(w * quality)

    dw, src_c = _box_down_and_nearest_up(w, w2)
    dh, src_r = _box_down_and_nearest_up(h, h2)

    x = img.reshape(-1, h, w)
    u8 = np.floor(np.clip(x, 0.0, 1.0) * 255.0).astype(np.float32)
    a1 = np.clip(np.floor(u8 @ dw + 0.5), 0.0, 255.0)                       # (Q, H, w2)
    a2 = np.einsum("qhv,hk->qkv", a1, dh)
    a2 = np.clip(np.floor(a2 + 0.5), 0.0, 255.0)                            # (Q, h2, w2)
    up = a2[:, src_r, :][:, :, src_c]                                       # (Q, H, W)
    return (up / 255.0).astype(np.float32).reshape(shape)


def _check(out, ref, *, exact: bool):
    diff = float(np.max(np.abs(np.asarray(out) - np.asarray(ref))))
    # For severities whose box weights are not dyadic (1/3 taps), allow at
    # most 1 uint8 LSB of deviation from the float reference (possible only
    # near round-half ties under a different f32 summation order).
    tol = 1e-5 if exact else (1.0 / 255.0 + 1e-5)
    assert diff <= tol, f"max abs diff {diff} exceeds tolerance {tol}"


if __name__ == "__main__":
    key = jax.random.PRNGKey(0)
    k1, k2 = jax.random.split(key)

    # Batched NCHW convenience path (planes folded onto the parallel grid axis).
    img_nchw = jax.random.uniform(k1, (2, 4, 16, 16), dtype=jnp.float32)

    # severity 3 -> quality 0.4 (1/3-weight taps, f32 path);
    # severity 2 -> quality 0.5 (bf16-exact weights, bf16 MXU path, exact result).
    for severity, exact in ((3, False), (2, True)):
        out = jax.block_until_ready(pixelate(img_nchw, severity))
        ref = _pixelate_reference(np.asarray(img_nchw), severity)
        assert out.shape == img_nchw.shape and out.dtype == img_nchw.dtype
        _check(out, ref, exact=exact)

    # Unbatched CHW (what the module's forward implies).
    img_chw = jax.random.uniform(k2, (4, 16, 16), dtype=jnp.float32)
    out_chw = jax.block_until_ready(pixelate(img_chw, 3))
    ref_chw = _pixelate_reference(np.asarray(img_chw), 3)
    assert out_chw.shape == img_chw.shape and out_chw.dtype == img_chw.dtype
    _check(out_chw, ref_chw, exact=False)

    # Severity 0 is the identity.
    assert bool(jnp.all(pixelate(img_chw, 0) == img_chw))

    print("KERNEL_OK")
</pallas_src>

<mosaic_0001>
module attributes {stable_mosaic.version = 11 : i64} {
  func.func @_pixelate_kernel(%arg0: i32, %arg1: memref<4x16x16xf32, #tpu.memory_space<vmem>>, %arg2: memref<16x16xf32, #tpu.memory_space<vmem>>, %arg3: memref<16x16xf32, #tpu.memory_space<vmem>>, %arg4: memref<4x16x16xf32, #tpu.memory_space<vmem>>) attributes {dimension_semantics = [#tpu.dimension_semantics<parallel>], iteration_bounds = array<i64: 2>, scalar_prefetch = 0 : i64, scratch_operands = 0 : i64, tpu.core_type = #tpu.core_type<tc>, window_params = [{transform_indices = @transform_0, window_bounds = array<i64: 4, 16, 16>}, {pipeline_mode = #tpu.pipeline_mode<synchronous>, transform_indices = @transform_1, window_bounds = array<i64: 16, 16>}, {pipeline_mode = #tpu.pipeline_mode<synchronous>, transform_indices = @transform_2, window_bounds = array<i64: 16, 16>}, {transform_indices = @transform_3, window_bounds = array<i64: 4, 16, 16>}]} {
    %c0 = arith.constant 0 : index
    %c0_0 = arith.constant 0 : index
    %c0_1 = arith.constant 0 : index
    %0 = vector.load %arg1[%c0, %c0_0, %c0_1] : memref<4x16x16xf32, #tpu.memory_space<vmem>>, vector<4x16x16xf32>
    %cst = arith.constant 0.000000e+00 : f32
    %cst_2 = arith.constant 1.000000e+00 : f32
    %1 = vector.broadcast %cst : f32 to vector<4x16x16xf32>
    %2 = arith.maximumf %1, %0 : vector<4x16x16xf32>
    %3 = vector.broadcast %cst_2 : f32 to vector<4x16x16xf32>
    %4 = arith.minimumf %3, %2 : vector<4x16x16xf32>
    %cst_3 = arith.constant 2.550000e+02 : f32
    %5 = vector.broadcast %cst_3 : f32 to vector<4x16x16xf32>
    %6 = arith.mulf %4, %5 : vector<4x16x16xf32>
    %7 = math.floor %6 : vector<4x16x16xf32>
    %8 = vector.shape_cast %7 : vector<4x16x16xf32> to vector<64x16xf32>
    %c0_4 = arith.constant 0 : index
    %c0_5 = arith.constant 0 : index
    %9 = vector.load %arg2[%c0_4, %c0_5] : memref<16x16xf32, #tpu.memory_space<vmem>>, vector<16x16xf32>
    %cst_6 = arith.constant dense<0.000000e+00> : vector<64x16xf32>
    %10 = tpu.matmul %8, %9, %cst_6 {dimension_numbers = #tpu.dot_dimension_numbers<[1], [0], [0], [1], [0, 0, 1, 1], [], []>} : vector<64x16xf32>, vector<16x16xf32>, vector<64x16xf32> -> vector<64x16xf32>
    %cst_7 = arith.constant 5.000000e-01 : f32
    %11 = vector.broadcast %cst_7 : f32 to vector<64x16xf32>
    %12 = arith.addf %10, %11 : vector<64x16xf32>
    %13 = math.floor %12 : vector<64x16xf32>
    %14 = vector.shape_cast %13 : vector<64x16xf32> to vector<4x16x16xf32>
    %15 = tpu.transpose %14, [0, 2, 1] : vector<4x16x16xf32> -> vector<4x16x16xf32>
    %16 = vector.shape_cast %15 : vector<4x16x16xf32> to vector<64x16xf32>
    %c0_8 = arith.constant 0 : index
    %c0_9 = arith.constant 0 : index
    %17 = vector.load %arg3[%c0_8, %c0_9] : memref<16x16xf32, #tpu.memory_space<vmem>>, vector<16x16xf32>
    %cst_10 = arith.constant dense<0.000000e+00> : vector<64x16xf32>
    %18 = tpu.matmul %16, %17, %cst_10 {dimension_numbers = #tpu.dot_dimension_numbers<[1], [0], [0], [1], [0, 0, 1, 1], [], []>} : vector<64x16xf32>, vector<16x16xf32>, vector<64x16xf32> -> vector<64x16xf32>
    %cst_11 = arith.constant 5.000000e-01 : f32
    %19 = vector.broadcast %cst_11 : f32 to vector<64x16xf32>
    %20 = arith.addf %18, %19 : vector<64x16xf32>
    %21 = math.floor %20 : vector<64x16xf32>
    %22 = vector.shape_cast %21 : vector<64x16xf32> to vector<4x16x16xf32>
    %23 = tpu.transpose %22, [0, 2, 1] : vector<4x16x16xf32> -> vector<4x16x16xf32>
    %cst_12 = arith.constant 0.00392156886 : f32
    %24 = vector.broadcast %cst_12 : f32 to vector<4x16x16xf32>
    %25 = arith.mulf %23, %24 : vector<4x16x16xf32>
    %c0_13 = arith.constant 0 : index
    %c0_14 = arith.constant 0 : index
    %c0_15 = arith.constant 0 : index
    %26 = vector.load %arg4[%c0_13, %c0_14, %c0_15] : memref<4x16x16xf32, #tpu.memory_space<vmem>>, vector<4x16x16xf32>
    tpu.vector_store %arg4[%c0_13, %c0_14, %c0_15], %25 {strides = array<i32>} : memref<4x16x16xf32, #tpu.memory_space<vmem>>, vector<4x16x16xf32>,
    return
  }
  func.func @transform_0(%arg0: i32) -> (i32, i32, i32) {
    %c0_i32 = arith.constant 0 : i32
    %c0_i32_0 = arith.constant 0 : i32
    %c0_i32_1 = arith.constant 0 : i32
    return %arg0, %c0_i32, %c0_i32_0 : i32, i32, i32
  }
  func.func @transform_1(%arg0: i32) -> (i32, i32) {
    %c0_i32 = arith.constant 0 : i32
    %c0_i32_0 = arith.constant 0 : i32
    %c0_i32_1 = arith.constant 0 : i32
    return %c0_i32, %c0_i32_0 : i32, i32
  }
  func.func @transform_2(%arg0: i32) -> (i32, i32) {
    %c0_i32 = arith.constant 0 : i32
    %c0_i32_0 = arith.constant 0 : i32
    %c0_i32_1 = arith.constant 0 : i32
    return %c0_i32, %c0_i32_0 : i32, i32
  }
  func.func @transform_3(%arg0: i32) -> (i32, i32, i32) {
    %c0_i32 = arith.constant 0 : i32
    %c0_i32_0 = arith.constant 0 : i32
    %c0_i32_1 = arith.constant 0 : i32
    return %arg0, %c0_i32, %c0_i32_0 : i32, i32, i32
  }
}

</mosaic_0001>

<llo_original>
// kernel: tpu_custom_call.1
$region0: #{tpu_custom_call.1}
  #allocation0 [shape = 'u32[]', space=smem, size = 0x4, offset = 0x4, fixed_abs, tag = 'smem constant byte address 0x4 - core index']
  #allocation1 [shape = 'u32[144,128]{1,0:T(1,128)}', space=vmem, size = 0x12000, scoped, tag = 'internal scratch']
  %s0 = inlined_call_operand.hbm [shape: f32[8,16,16], index: 0, kind: input, shape index: {}]
  %s1 = inlined_call_operand.hbm [shape: f32[16,16], index: 1, kind: input, shape index: {}]
  %s2 = inlined_call_operand.hbm [shape: f32[16,16], index: 2, kind: input, shape index: {}]
  %s3 = inlined_call_operand.hbm [shape: f32[8,16,16], index: 3, kind: output, shape index: {}]
  %s4 = sld [smem:[#allocation0]]
  $region57: #{tpu_custom_call.1} parent=0
    _
  %s6 = ssub.s32 1, %s4
  %s7 = scalar_select 0, %s6, %s4
  $region1: #{tpu_custom_call.1} parent=0
    #allocation2 [shape = 'u8[65536]{0}', space=vmem, size = 0x10000, scoped, tag = 'input window, operand 0']
    #allocation3 [shape = 's32[2]{0}', space=sflag, size = 0x8, scoped, tag = 'scoped memory for tpu_custom_call.1']
    #allocation4 [shape = 's32[2]{0}', space=sflag, size = 0x8, scoped, tag = 'scoped memory for tpu_custom_call.1']
    #allocation5 [shape = 'u8[8192]{0}', space=vmem, size = 0x2000, scoped, tag = 'input window, operand 1, single buffered']
    #allocation6 [shape = 's32[1]{0}', space=sflag, size = 0x4, scoped, tag = 'scoped memory for tpu_custom_call.1']
    #allocation7 [shape = 'u8[8192]{0}', space=vmem, size = 0x2000, scoped, tag = 'input window, operand 2, single buffered']
    #allocation8 [shape = 'u8[65536]{0}', space=vmem, size = 0x10000, scoped, tag = 'output window, operand 0']
    %8 = vsyncpa [#allocation3], 0
    %s9 = scalar_lea.sflag [#allocation3], 1
    %10 = vsyncpa %s9, 0
    %11 = vsyncpa [#allocation6], 0
    %12 = vsyncpa [#allocation4], 0
    %s13 = scalar_lea.sflag [#allocation4], 1
    %14 = vsyncpa %s13, 0
    loop: start=0, step=1, limit=4
    $region2: #{tpu_custom_call.1} parent=1 // loop_pre_header
      _
    $region3: #{tpu_custom_call.1} parent=1 // loop_header
      %s16 = sphi 0, %s20
      %p17 = scmp.ge.s32.totalorder %s16, 4
      %s26 = sphi 0, %s28
      %s29 = sphi 0, %s26
      %s30 = sphi 0, %s29
      %s46 = sphi 0, %s30
      %s50 = sphi 0, %s50
      %s52 = sphi 0, %s50
      %s53 = sphi 0, %s52
      %s67 = sphi 0, %s53
      %s71 = sphi 0, %s71
      %s73 = sphi 0, %s71
      %s74 = sphi 0, %s73
      %s88 = sphi 0, %s74
      %s94 = sphi 0, %s96
      %s97 = sphi 0, %s94
      %s98 = sphi 0, %s97
      %s114 = sphi 0, %s98
    $region4: #{tpu_custom_call.1} parent=1 // loop_header_branch
      %19 = sbr.rel (%p17) target = $region8
    $region5: #{tpu_custom_call.1} parent=1 // loop_body
      %s21 = ssub.s32 %s16, 1
      %s22 = ssub.s32 %s16, 2
      %s23 = sadd.s32 %s16, 1
      %s24 = ssub.s32 %s16, %s23
      %p25 = scmp.eq.s32.totalorder %s24, 0
      %s27 = sadd.s32 %s26, 1
      %s28 = scalar_select %p25, %s26, %s27
      %p31 = pneg %p25
      %p32 = scmp.eq.s32.totalorder %s16, 1
      %p33 = por %p31, %p32
      %p34 = scmp.ne.s32.totalorder %s26, %s29
      %p35 = scmp.eq.s32.totalorder %s16, 0
      %p36 = por %p34, %p35
      %p37 = scmp.ne.s32.totalorder %s26, %s29
      %p38 = scmp.eq.s32.totalorder %s21, 1
      %p39 = por %p37, %p38
      %p40 = scmp.ne.s32.totalorder %s29, %s30
      %p41 = scmp.eq.s32.totalorder %s21, 0
      %p42 = por %p40, %p41
      %p43 = scmp.ne.s32.totalorder %s29, %s30
      %p44 = scmp.eq.s32.totalorder %s22, 1
      %p45 = por %p43, %p44
      %p47 = scmp.ne.s32.totalorder %s30, %s46
      %p48 = scmp.eq.s32.totalorder %s22, 0
      %p49 = por %p47, %p48
      %s51 = sadd.s32 %s50, 1
      %p54 = scmp.eq.s32.totalorder %s16, 1
      %p55 = scmp.ne.s32.totalorder %s50, %s52
      %p56 = scmp.eq.s32.totalorder %s16, 0
      %p57 = por %p55, %p56
      %p58 = scmp.ne.s32.totalorder %s50, %s52
      %p59 = scmp.eq.s32.totalorder %s21, 1
      %p60 = por %p58, %p59
      %p61 = scmp.ne.s32.totalorder %s52, %s53
      %p62 = scmp.eq.s32.totalorder %s21, 0
      %p63 = por %p61, %p62
      %p64 = scmp.ne.s32.totalorder %s52, %s53
      %p65 = scmp.eq.s32.totalorder %s22, 1
      %p66 = por %p64, %p65
      %p68 = scmp.ne.s32.totalorder %s53, %s67
      %p69 = scmp.eq.s32.totalorder %s22, 0
      %p70 = por %p68, %p69
      %s72 = sadd.s32 %s71, 1
      %p75 = scmp.eq.s32.totalorder %s16, 1
      %p76 = scmp.ne.s32.totalorder %s71, %s73
      %p77 = scmp.eq.s32.totalorder %s16, 0
      %p78 = por %p76, %p77
      %p79 = scmp.ne.s32.totalorder %s71, %s73
      %p80 = scmp.eq.s32.totalorder %s21, 1
      %p81 = por %p79, %p80
      %p82 = scmp.ne.s32.totalorder %s73, %s74
      %p83 = scmp.eq.s32.totalorder %s21, 0
      %p84 = por %p82, %p83
      %p85 = scmp.ne.s32.totalorder %s73, %s74
      %p86 = scmp.eq.s32.totalorder %s22, 1
      %p87 = por %p85, %p86
      %p89 = scmp.ne.s32.totalorder %s74, %s88
      %p90 = scmp.eq.s32.totalorder %s22, 0
      %p91 = por %p89, %p90
      %s92 = ssub.s32 %s16, %s23
      %p93 = scmp.eq.s32.totalorder %s92, 0
      %s95 = sadd.s32 %s94, 1
      %s96 = scalar_select %p93, %s94, %s95
      %p99 = pneg %p93
      %p100 = scmp.eq.s32.totalorder %s16, 1
      %p101 = por %p99, %p100
      %p102 = scmp.ne.s32.totalorder %s94, %s97
      %p103 = scmp.eq.s32.totalorder %s16, 0
      %p104 = por %p102, %p103
      %p105 = scmp.ne.s32.totalorder %s94, %s97
      %p106 = scmp.eq.s32.totalorder %s21, 1
      %p107 = por %p105, %p106
      %p108 = scmp.ne.s32.totalorder %s97, %s98
      %p109 = scmp.eq.s32.totalorder %s21, 0
      %p110 = por %p108, %p109
      %p111 = scmp.ne.s32.totalorder %s97, %s98
      %p112 = scmp.eq.s32.totalorder %s22, 1
      %p113 = por %p111, %p112
      %p115 = scmp.ne.s32.totalorder %s98, %s114
      %p116 = scmp.eq.s32.totalorder %s22, 0
      %p117 = por %p115, %p116
      %p118 = scmp.le.s32.totalorder 1, %s16
      %p119 = scmp.lt.s32.totalorder %s16, 3
      %p120 = pnand %p118, %p119
      %p121 = pneg %p120
      // Predicated region
      $region9: #{tpu_custom_call.1} parent=5 // pred_check
        _
      $region10: #{tpu_custom_call.1} parent=5 // pred_check_branch
        %123 = sbr.rel (%p120) target = $region12
      $region11: #{tpu_custom_call.1} parent=5 // pred_region
        %s124 = ssub.s32 %s16, 1
        // Predicated region
        $region13: #{tpu_custom_call.1} parent=11 // pred_check
          %p125 = pneg %p63
        $region14: #{tpu_custom_call.1} parent=11 // pred_check_branch
          %127 = sbr.rel (%p125) target = $region16
        $region15: #{tpu_custom_call.1} parent=11 // pred_region
          %s129 = ssub.s32 256, 256
          %130 = vsyncadd [#allocation6], %s129
          %s131 = sshll.u32 [#allocation5], 4
          %s132 = int_to_ptr.vmem [resolvable:$true] %s131
          %137 = dma.hbm_to_vmem [thread:$0]  %s1, 256, %s132, [#allocation6], 128, 128, 8
        $region16: #{tpu_custom_call.1} parent=11 // pred_fallthru
          _
        // Predicated region
        $region17: #{tpu_custom_call.1} parent=11 // pred_check
          %p138 = pneg %p84
        $region18: #{tpu_custom_call.1} parent=11 // pred_check_branch
          %140 = sbr.rel (%p138) target = $region20
        $region19: #{tpu_custom_call.1} parent=11 // pred_region
          %s142 = ssub.s32 256, 256
          %143 = vsyncadd [#allocation6], %s142
          %s144 = sshll.u32 [#allocation7], 4
          %s145 = int_to_ptr.vmem [resolvable:$true] %s144
          %150 = dma.hbm_to_vmem [thread:$0]  %s2, 256, %s145, [#allocation6], 128, 128, 8
        $region20: #{tpu_custom_call.1} parent=11 // pred_fallthru
          _
      $region12: #{tpu_custom_call.1} parent=5 // pred_fallthru
        _
      %p151 = scmp.lt.s32.totalorder %s16, 2
      // Predicated region
      $region21: #{tpu_custom_call.1} parent=5 // pred_check
        %p152 = pneg %p151
      $region22: #{tpu_custom_call.1} parent=5 // pred_check_branch
        %154 = sbr.rel (%p152) target = $region24
      $region23: #{tpu_custom_call.1} parent=5 // pred_region
        // Predicated region
        $region25: #{tpu_custom_call.1} parent=23 // pred_check
          %p155 = pneg %p36
        $region26: #{tpu_custom_call.1} parent=23 // pred_check_branch
          %157 = sbr.rel (%p155) target = $region28
        $region27: #{tpu_custom_call.1} parent=23 // pred_region
          %s158 = sand.u32 %s26, 1
          %s159 = scalar_lea.sflag [#allocation3], %s158
          %s160 = sand.u32 %s26, 1
          %s161 = smul.addr %s160, 64
          %s162 = scalar_lea.vmem [#allocation2], %s161
          %s163 = smul.u32 4, %s16
          %s165 = ssub.s32 1024, 1024
          %166 = vsyncadd %s159, %s165
          %s167 = smul.addr %s163, 2
          %s168 = smul.addr %s167, 128
          %s169 = scalar_lea.hbm %s0, %s168
          %s170 = sshll.u32 %s162, 4
          %s171 = int_to_ptr.vmem [resolvable:$true] %s170
          %176 = dma.hbm_to_vmem [thread:$0]  %s169, 1024, %s171, %s159, 128, 128, 8
        $region28: #{tpu_custom_call.1} parent=23 // pred_fallthru
          _
      $region24: #{tpu_custom_call.1} parent=5 // pred_fallthru
        _
      %p177 = scmp.le.s32.totalorder 1, %s16
      %p178 = scmp.lt.s32.totalorder %s16, 3
      %p179 = pnand %p177, %p178
      %p180 = pneg %p179
      // Predicated region
      $region29: #{tpu_custom_call.1} parent=5 // pred_check
        _
      $region30: #{tpu_custom_call.1} parent=5 // pred_check_branch
        %182 = sbr.rel (%p179) target = $region32
      $region31: #{tpu_custom_call.1} parent=5 // pred_region
        %s183 = ssub.s32 %s16, 1
        %s184 = sand.u32 %s29, 1
        %s185 = scalar_lea.sflag [#allocation3], %s184
        %s186 = sand.u32 %s29, 1
        %s187 = smul.addr %s186, 64
        %s188 = scalar_lea.vmem [#allocation2], %s187
        // Predicated region
        $region33: #{tpu_custom_call.1} parent=31 // pred_check
          %p189 = pneg %p42
        $region34: #{tpu_custom_call.1} parent=31 // pred_check_branch
          %191 = sbr.rel (%p189) target = $region36
        $region35: #{tpu_custom_call.1} parent=31 // pred_region
          %192 = dma.done %s185, 1024
        $region36: #{tpu_custom_call.1} parent=31 // pred_fallthru
          _
        // Predicated region
        $region37: #{tpu_custom_call.1} parent=31 // pred_check
          %p193 = pneg %p63
        $region38: #{tpu_custom_call.1} parent=31 // pred_check_branch
          %195 = sbr.rel (%p193) target = $region40
        $region39: #{tpu_custom_call.1} parent=31 // pred_region
          %196 = dma.done [#allocation6], 256
        $region40: #{tpu_custom_call.1} parent=31 // pred_fallthru
          _
        // Predicated region
        $region41: #{tpu_custom_call.1} parent=31 // pred_check
          %p197 = pneg %p84
        $region42: #{tpu_custom_call.1} parent=31 // pred_check_branch
          %199 = sbr.rel (%p197) target = $region44
        $region43: #{tpu_custom_call.1} parent=31 // pred_region
          %200 = dma.done [#allocation6], 256
        $region44: #{tpu_custom_call.1} parent=31 // pred_fallthru
          _
        %s201 = sand.u32 %s29, 1
        %s202 = scalar_lea.sflag [#allocation3], %s201
        %s203 = sand.u32 %s29, 1
        %s204 = smul.addr %s203, 64
        %s205 = scalar_lea.vmem [#allocation2], %s204
        %p206 = pneg %p42
        %p207 = pneg %p39
        %p208 = pneg %p63
        %p209 = pneg %p60
        %p210 = pneg %p84
        %p211 = pneg %p81
        %p212 = pneg %p110
        %p213 = pneg %p107
        %s214 = sand.u32 %s97, 1
        %s215 = scalar_lea.sflag [#allocation4], %s214
        %s216 = sand.u32 %s97, 1
        %s217 = smul.addr %s216, 64
        %s218 = scalar_lea.vmem [#allocation8], %s217
        %s219 = smul.u32 4, %s21
        %s220 = smul.u32 4, %s21
        %v221 = vld [vmem:[%s188] sm:$0xff]
        %v222 = vld [vmem:[%s188 + $0x8] sm:$0xff]
        %v223 = vld [vmem:[%s188 + $0x10] sm:$0xff]
        %v224 = vld [vmem:[%s188 + $0x18] sm:$0xff]
        %v225 = vld [vmem:[%s188 + $0x20] sm:$0xff]
        %v226 = vld [vmem:[%s188 + $0x28] sm:$0xff]
        %v227 = vld [vmem:[%s188 + $0x30] sm:$0xff]
        %v228 = vld [vmem:[%s188 + $0x38] sm:$0xff]
        %v229 = vmax.f32 %v221, 0.0
        %v230 = vmax.f32 %v222, 0.0
        %v231 = vmax.f32 %v223, 0.0
        %v232 = vmax.f32 %v224, 0.0
        %v233 = vmax.f32 %v225, 0.0
        %v234 = vmax.f32 %v226, 0.0
        %v235 = vmax.f32 %v227, 0.0
        %v236 = vmax.f32 %v228, 0.0
        %v237 = vmin.f32 %v229, 1.0
        %v238 = vmin.f32 %v230, 1.0
        %v239 = vmin.f32 %v231, 1.0
        %v240 = vmin.f32 %v232, 1.0
        %v241 = vmin.f32 %v233, 1.0
        %v242 = vmin.f32 %v234, 1.0
        %v243 = vmin.f32 %v235, 1.0
        %v244 = vmin.f32 %v236, 1.0
        %v245 = vmul.f32 %v237, 255.0
        %v246 = vmul.f32 %v238, 255.0
        %v247 = vmul.f32 %v239, 255.0
        %v248 = vmul.f32 %v240, 255.0
        %v249 = vmul.f32 %v241, 255.0
        %v250 = vmul.f32 %v242, 255.0
        %v251 = vmul.f32 %v243, 255.0
        %v252 = vmul.f32 %v244, 255.0
        %v253 = vfloor.f32 %v245
        %v254 = vfloor.f32 %v246
        %v255 = vfloor.f32 %v247
        %v256 = vfloor.f32 %v248
        %v257 = vfloor.f32 %v249
        %v258 = vfloor.f32 %v250
        %v259 = vfloor.f32 %v251
        %v260 = vfloor.f32 %v252
        %v261 = vld [vmem:[#allocation5] sm:$0xff]
        %v262 = vld [vmem:[#allocation5 + $0x8] sm:$0xff]
        %vm263 = vcmask 130048
        %v265 = vsel %vm263, %v253, 0
        %v268 = vsel %vm263, %v254, 0
        %v271 = vsel %vm263, %v255, 0
        %v274 = vsel %vm263, %v256, 0
        %v277 = vsel %vm263, %v257, 0
        %v280 = vsel %vm263, %v258, 0
        %v283 = vsel %vm263, %v259, 0
        %v286 = vsel %vm263, %v260, 0
        %288 = vmatprep.subr.mxu0 0.0
        %289 = vmatpush1.msra.mxu0 %v261
        %290 = vmatprep.subr.mxu0 0.0
        %291 = vmatpush1.msra.mxu0 %v262
        %292 = vmatprep.subr.mxu0 0.0
        %293 = vmatpush1.msra.mxu0 0.0
        %294 = vmatprep.subr.mxu0 0.0
        %295 = vmatpush1.msra.mxu0 0.0
        %296 = vmatprep.subr.mxu0 0.0
        %297 = vmatpush1.msra.mxu0 0.0
        %298 = vmatprep.subr.mxu0 0.0
        %299 = vmatpush1.msra.mxu0 0.0
        %300 = vmatprep.subr.mxu0 0.0
        %301 = vmatpush1.msra.mxu0 0.0
        %302 = vmatprep.subr.mxu0 0.0
        %303 = vmatpush1.msra.mxu0 0.0
        %304 = vmatprep.subr.mxu0 0.0
        %305 = vmatpush1.msra.mxu0 0.0
        %306 = vmatprep.subr.mxu0 0.0
        %307 = vmatpush1.msra.mxu0 0.0
        %308 = vmatprep.subr.mxu0 0.0
        %309 = vmatpush1.msra.mxu0 0.0
        %310 = vmatprep.subr.mxu0 0.0
        %311 = vmatpush1.msra.mxu0 0.0
        %312 = vmatprep.subr.mxu0 0.0
        %313 = vmatpush1.msra.mxu0 0.0
        %314 = vmatprep.subr.mxu0 0.0
        %315 = vmatpush1.msra.mxu0 0.0
        %316 = vmatprep.subr.mxu0 0.0
        %317 = vmatpush1.msra.mxu0 0.0
        %318 = vmatprep.subr.mxu0 0.0
        %319 = vmatpush1.msra.mxu0 0.0
        %320 = vmatprep.subr.mxu0 0.0
        %321 = vmatpush1.msra.mxu0 0.0
        %322 = vmatprep.subr.mxu0 0.0
        %323 = vmatpush1.msra.mxu0 0.0
        %324 = vmatprep.subr.mxu0 0.0
        %325 = vmatpush1.msra.mxu0 0.0
        %326 = vmatprep.subr.mxu0 0.0
        %327 = vmatpush1.msra.mxu0 0.0
        %328 = vmatprep.subr.mxu0 0.0
        %329 = vmatpush1.msra.mxu0 0.0
        %330 = vmatprep.subr.mxu0 0.0
        %331 = vmatpush1.msra.mxu0 0.0
        %332 = vmatprep.subr.mxu0 0.0
        %333 = vmatpush1.msra.mxu0 0.0
        %334 = vmatprep.subr.mxu0 0.0
        %335 = vmatpush1.msra.mxu0 0.0
        %336 = vmatprep.subr.mxu0 0.0
        %337 = vmatpush1.msra.mxu0 0.0
        %338 = vmatprep.subr.mxu0 0.0
        %339 = vmatpush1.msra.mxu0 0.0
        %340 = vmatprep.subr.mxu0 0.0
        %341 = vmatpush1.msra.mxu0 0.0
        %342 = vmatprep.subr.mxu0 0.0
        %343 = vmatpush1.msra.mxu0 0.0
        %344 = vmatprep.subr.mxu0 0.0
        %345 = vmatpush1.msra.mxu0 0.0
        %346 = vmatprep.subr.mxu0 0.0
        %347 = vmatpush1.msra.mxu0 0.0
        %348 = vmatprep.subr.mxu0 0.0
        %349 = vmatpush1.msra.mxu0 0.0
        %350 = vmatprep.subr.mxu0 0.0
        %351 = vmatpush1.msra.mxu0 0.0
        %352 = vmatprep.mubr.f32.mxu0 0.0
        %353 = vmatmul.mubr.f32.gmra.mrb[0].mxu0 %v265
        %v354 = vpop.f32.mrb[0].mxu0
        %v355 = vadd.f32 0.5, %v354
        %v356 = vpop.f32.mrb[0].mxu0
        %357 = vmatprep.mubr.f32.mxu0 0.0
        %358 = vmatmul.mubr.f32.gmra.mrb[0].mxu0 %v268
        %v359 = vpop.f32.mrb[0].mxu0
        %v360 = vadd.f32 0.5, %v359
        %v361 = vpop.f32.mrb[0].mxu0
        %362 = vmatprep.mubr.f32.mxu0 0.0
        %363 = vmatmul.mubr.f32.gmra.mrb[0].mxu0 %v271
        %v364 = vpop.f32.mrb[0].mxu0
        %v365 = vadd.f32 0.5, %v364
        %v366 = vpop.f32.mrb[0].mxu0
        %367 = vmatprep.mubr.f32.mxu0 0.0
        %368 = vmatmul.mubr.f32.gmra.mrb[0].mxu0 %v274
        %v369 = vpop.f32.mrb[0].mxu0
        %v370 = vadd.f32 0.5, %v369
        %v371 = vpop.f32.mrb[0].mxu0
        %372 = vmatprep.mubr.f32.mxu0 0.0
        %373 = vmatmul.mubr.f32.gmra.mrb[0].mxu0 %v277
        %v374 = vpop.f32.mrb[0].mxu0
        %v375 = vadd.f32 0.5, %v374
        %v376 = vpop.f32.mrb[0].mxu0
        %377 = vmatprep.mubr.f32.mxu0 0.0
        %378 = vmatmul.mubr.f32.gmra.mrb[0].mxu0 %v280
        %v379 = vpop.f32.mrb[0].mxu0
        %v380 = vadd.f32 0.5, %v379
        %v381 = vpop.f32.mrb[0].mxu0
        %382 = vmatprep.mubr.f32.mxu0 0.0
        %383 = vmatmul.mubr.f32.gmra.mrb[0].mxu0 %v283
        %v384 = vpop.f32.mrb[0].mxu0
        %v385 = vadd.f32 0.5, %v384
        %v386 = vpop.f32.mrb[0].mxu0
        %387 = vmatprep.mubr.f32.mxu0 0.0
        %388 = vmatmul.mubr.f32.gmra.mrb[0].mxu0 %v286
        %v389 = vpop.f32.mrb[0].mxu0
        %v390 = vadd.f32 0.5, %v389
        %v391 = vpop.f32.mrb[0].mxu0
        %392 = vdwg.mxu0
        %v393 = vfloor.f32 %v355
        %v394 = vfloor.f32 %v360
        %v395 = vfloor.f32 %v365
        %v396 = vfloor.f32 %v370
        %v397 = vfloor.f32 %v375
        %v398 = vfloor.f32 %v380
        %v399 = vfloor.f32 %v385
        %v400 = vfloor.f32 %v390
        %401 = vxpose.xlu0.b32.start [1/16] %v393, 128
        %402 = vxpose.xlu0.b32.cont [2/16] %v394, 128
        %403 = vxpose.xlu0.b32.cont [3/16] 0.0, 128
        %404 = vxpose.xlu0.b32.cont [4/16] 0.0, 128
        %405 = vxpose.xlu0.b32.cont [5/16] 0.0, 128
        %406 = vxpose.xlu0.b32.cont [6/16] 0.0, 128
        %407 = vxpose.xlu0.b32.cont [7/16] 0.0, 128
        %408 = vxpose.xlu0.b32.cont [8/16] 0.0, 128
        %409 = vxpose.xlu0.b32.cont [9/16] 0.0, 128
        %410 = vxpose.xlu0.b32.cont [10/16] 0.0, 128
        %411 = vxpose.xlu0.b32.cont [11/16] 0.0, 128
        %412 = vxpose.xlu0.b32.cont [12/16] 0.0, 128
        %413 = vxpose.xlu0.b32.cont [13/16] 0.0, 128
        %414 = vxpose.xlu0.b32.cont [14/16] 0.0, 128
        %415 = vxpose.xlu0.b32.cont [15/16] 0.0, 128
        %416 = vxpose.xlu0.b32.end [16/16] 0.0, 128
        %v417 = vpop.trf.xlu0
        %v418 = vpop.trf.xlu0
        %v419 = vpop.trf.xlu0
        %v420 = vpop.trf.xlu0
        %v421 = vpop.trf.xlu0
        %v422 = vpop.trf.xlu0
        %v423 = vpop.trf.xlu0
        %v424 = vpop.trf.xlu0
        %v425 = vpop.trf.xlu0
        %v426 = vpop.trf.xlu0
        %v427 = vpop.trf.xlu0
        %v428 = vpop.trf.xlu0
        %v429 = vpop.trf.xlu0
        %v430 = vpop.trf.xlu0
        %v431 = vpop.trf.xlu0
        %v432 = vpop.trf.xlu0
        %433 = vxpose.xlu0.b32.start [1/16] %v395, 128
        %434 = vxpose.xlu0.b32.cont [2/16] %v396, 128
        %435 = vxpose.xlu0.b32.cont [3/16] 0.0, 128
        %436 = vxpose.xlu0.b32.cont [4/16] 0.0, 128
        %437 = vxpose.xlu0.b32.cont [5/16] 0.0, 128
        %438 = vxpose.xlu0.b32.cont [6/16] 0.0, 128
        %439 = vxpose.xlu0.b32.cont [7/16] 0.0, 128
        %440 = vxpose.xlu0.b32.cont [8/16] 0.0, 128
        %441 = vxpose.xlu0.b32.cont [9/16] 0.0, 128
        %442 = vxpose.xlu0.b32.cont [10/16] 0.0, 128
        %443 = vxpose.xlu0.b32.cont [11/16] 0.0, 128
        %444 = vxpose.xlu0.b32.cont [12/16] 0.0, 128
        %445 = vxpose.xlu0.b32.cont [13/16] 0.0, 128
        %446 = vxpose.xlu0.b32.cont [14/16] 0.0, 128
        %447 = vxpose.xlu0.b32.cont [15/16] 0.0, 128
        %448 = vxpose.xlu0.b32.end [16/16] 0.0, 128
        %v449 = vpop.trf.xlu0
        %v450 = vpop.trf.xlu0
        %v451 = vpop.trf.xlu0
        %v452 = vpop.trf.xlu0
        %v453 = vpop.trf.xlu0
        %v454 = vpop.trf.xlu0
        %v455 = vpop.trf.xlu0
        %v456 = vpop.trf.xlu0
        %v457 = vpop.trf.xlu0
        %v458 = vpop.trf.xlu0
        %v459 = vpop.trf.xlu0
        %v460 = vpop.trf.xlu0
        %v461 = vpop.trf.xlu0
        %v462 = vpop.trf.xlu0
        %v463 = vpop.trf.xlu0
        %v464 = vpop.trf.xlu0
        %465 = vxpose.xlu0.b32.start [1/16] %v397, 128
        %466 = vxpose.xlu0.b32.cont [2/16] %v398, 128
        %467 = vxpose.xlu0.b32.cont [3/16] 0.0, 128
        %468 = vxpose.xlu0.b32.cont [4/16] 0.0, 128
        %469 = vxpose.xlu0.b32.cont [5/16] 0.0, 128
        %470 = vxpose.xlu0.b32.cont [6/16] 0.0, 128
        %471 = vxpose.xlu0.b32.cont [7/16] 0.0, 128
        %472 = vxpose.xlu0.b32.cont [8/16] 0.0, 128
        %473 = vxpose.xlu0.b32.cont [9/16] 0.0, 128
        %474 = vxpose.xlu0.b32.cont [10/16] 0.0, 128
        %475 = vxpose.xlu0.b32.cont [11/16] 0.0, 128
        %476 = vxpose.xlu0.b32.cont [12/16] 0.0, 128
        %477 = vxpose.xlu0.b32.cont [13/16] 0.0, 128
        %478 = vxpose.xlu0.b32.cont [14/16] 0.0, 128
        %479 = vxpose.xlu0.b32.cont [15/16] 0.0, 128
        %480 = vxpose.xlu0.b32.end [16/16] 0.0, 128
        %v481 = vpop.trf.xlu0
        %v482 = vpop.trf.xlu0
        %v483 = vpop.trf.xlu0
        %v484 = vpop.trf.xlu0
        %v485 = vpop.trf.xlu0
        %v486 = vpop.trf.xlu0
        %v487 = vpop.trf.xlu0
        %v488 = vpop.trf.xlu0
        %v489 = vpop.trf.xlu0
        %v490 = vpop.trf.xlu0
        %v491 = vpop.trf.xlu0
        %v492 = vpop.trf.xlu0
        %v493 = vpop.trf.xlu0
        %v494 = vpop.trf.xlu0
        %v495 = vpop.trf.xlu0
        %v496 = vpop.trf.xlu0
        %497 = vxpose.xlu0.b32.start [1/16] %v399, 128
        %498 = vxpose.xlu0.b32.cont [2/16] %v400, 128
        %499 = vxpose.xlu0.b32.cont [3/16] 0.0, 128
        %500 = vxpose.xlu0.b32.cont [4/16] 0.0, 128
        %501 = vxpose.xlu0.b32.cont [5/16] 0.0, 128
        %502 = vxpose.xlu0.b32.cont [6/16] 0.0, 128
        %503 = vxpose.xlu0.b32.cont [7/16] 0.0, 128
        %504 = vxpose.xlu0.b32.cont [8/16] 0.0, 128
        %505 = vxpose.xlu0.b32.cont [9/16] 0.0, 128
        %506 = vxpose.xlu0.b32.cont [10/16] 0.0, 128
        %507 = vxpose.xlu0.b32.cont [11/16] 0.0, 128
        %508 = vxpose.xlu0.b32.cont [12/16] 0.0, 128
        %509 = vxpose.xlu0.b32.cont [13/16] 0.0, 128
        %510 = vxpose.xlu0.b32.cont [14/16] 0.0, 128
        %511 = vxpose.xlu0.b32.cont [15/16] 0.0, 128
        %512 = vxpose.xlu0.b32.end [16/16] 0.0, 128
        %v513 = vpop.trf.xlu0
        %v514 = vpop.trf.xlu0
        %v515 = vpop.trf.xlu0
        %v516 = vpop.trf.xlu0
        %v517 = vpop.trf.xlu0
        %v518 = vpop.trf.xlu0
        %v519 = vpop.trf.xlu0
        %v520 = vpop.trf.xlu0
        %v521 = vpop.trf.xlu0
        %v522 = vpop.trf.xlu0
        %v523 = vpop.trf.xlu0
        %v524 = vpop.trf.xlu0
        %v525 = vpop.trf.xlu0
        %v526 = vpop.trf.xlu0
        %v527 = vpop.trf.xlu0
        %v528 = vpop.trf.xlu0
        %v529 = vld [vmem:[#allocation7] sm:$0xff]
        %v530 = vld [vmem:[#allocation7 + $0x8] sm:$0xff]
        %v532 = vsel %vm263, %v417, 0
        %v535 = vsel %vm263, %v418, 0
        %v538 = vsel %vm263, %v449, 0
        %v541 = vsel %vm263, %v450, 0
        %v544 = vsel %vm263, %v481, 0
        %v547 = vsel %vm263, %v482, 0
        %v550 = vsel %vm263, %v513, 0
        %v553 = vsel %vm263, %v514, 0
        %555 = vmatprep.subr.mxu0 0.0
        %556 = vmatpush1.msra.mxu0 %v529
        %557 = vmatprep.subr.mxu0 0.0
        %558 = vmatpush1.msra.mxu0 %v530
        %559 = vmatprep.subr.mxu0 0.0
        %560 = vmatpush1.msra.mxu0 0.0
        %561 = vmatprep.subr.mxu0 0.0
        %562 = vmatpush1.msra.mxu0 0.0
        %563 = vmatprep.subr.mxu0 0.0
        %564 = vmatpush1.msra.mxu0 0.0
        %565 = vmatprep.subr.mxu0 0.0
        %566 = vmatpush1.msra.mxu0 0.0
        %567 = vmatprep.subr.mxu0 0.0
        %568 = vmatpush1.msra.mxu0 0.0
        %569 = vmatprep.subr.mxu0 0.0
        %570 = vmatpush1.msra.mxu0 0.0
        %571 = vmatprep.subr.mxu0 0.0
        %572 = vmatpush1.msra.mxu0 0.0
        %573 = vmatprep.subr.mxu0 0.0
        %574 = vmatpush1.msra.mxu0 0.0
        %575 = vmatprep.subr.mxu0 0.0
        %576 = vmatpush1.msra.mxu0 0.0
        %577 = vmatprep.subr.mxu0 0.0
        %578 = vmatpush1.msra.mxu0 0.0
        %579 = vmatprep.subr.mxu0 0.0
        %580 = vmatpush1.msra.mxu0 0.0
        %581 = vmatprep.subr.mxu0 0.0
        %582 = vmatpush1.msra.mxu0 0.0
        %583 = vmatprep.subr.mxu0 0.0
        %584 = vmatpush1.msra.mxu0 0.0
        %585 = vmatprep.subr.mxu0 0.0
        %586 = vmatpush1.msra.mxu0 0.0
        %587 = vmatprep.subr.mxu0 0.0
        %588 = vmatpush1.msra.mxu0 0.0
        %589 = vmatprep.subr.mxu0 0.0
        %590 = vmatpush1.msra.mxu0 0.0
        %591 = vmatprep.subr.mxu0 0.0
        %592 = vmatpush1.msra.mxu0 0.0
        %593 = vmatprep.subr.mxu0 0.0
        %594 = vmatpush1.msra.mxu0 0.0
        %595 = vmatprep.subr.mxu0 0.0
        %596 = vmatpush1.msra.mxu0 0.0
        %597 = vmatprep.subr.mxu0 0.0
        %598 = vmatpush1.msra.mxu0 0.0
        %599 = vmatprep.subr.mxu0 0.0
        %600 = vmatpush1.msra.mxu0 0.0
        %601 = vmatprep.subr.mxu0 0.0
        %602 = vmatpush1.msra.mxu0 0.0
        %603 = vmatprep.subr.mxu0 0.0
        %604 = vmatpush1.msra.mxu0 0.0
        %605 = vmatprep.subr.mxu0 0.0
        %606 = vmatpush1.msra.mxu0 0.0
        %607 = vmatprep.subr.mxu0 0.0
        %608 = vmatpush1.msra.mxu0 0.0
        %609 = vmatprep.subr.mxu0 0.0
        %610 = vmatpush1.msra.mxu0 0.0
        %611 = vmatprep.subr.mxu0 0.0
        %612 = vmatpush1.msra.mxu0 0.0
        %613 = vmatprep.subr.mxu0 0.0
        %614 = vmatpush1.msra.mxu0 0.0
        %615 = vmatprep.subr.mxu0 0.0
        %616 = vmatpush1.msra.mxu0 0.0
        %617 = vmatprep.subr.mxu0 0.0
        %618 = vmatpush1.msra.mxu0 0.0
        %619 = vmatprep.mubr.f32.mxu0 0.0
        %620 = vmatmul.mubr.f32.gmra.mrb[0].mxu0 %v532
        %v621 = vpop.f32.mrb[0].mxu0
        %v622 = vadd.f32 0.5, %v621
        %v623 = vpop.f32.mrb[0].mxu0
        %624 = vmatprep.mubr.f32.mxu0 0.0
        %625 = vmatmul.mubr.f32.gmra.mrb[0].mxu0 %v535
        %v626 = vpop.f32.mrb[0].mxu0
        %v627 = vadd.f32 0.5, %v626
        %v628 = vpop.f32.mrb[0].mxu0
        %629 = vmatprep.mubr.f32.mxu0 0.0
        %630 = vmatmul.mubr.f32.gmra.mrb[0].mxu0 %v538
        %v631 = vpop.f32.mrb[0].mxu0
        %v632 = vadd.f32 0.5, %v631
        %v633 = vpop.f32.mrb[0].mxu0
        %634 = vmatprep.mubr.f32.mxu0 0.0
        %635 = vmatmul.mubr.f32.gmra.mrb[0].mxu0 %v541
        %v636 = vpop.f32.mrb[0].mxu0
        %v637 = vadd.f32 0.5, %v636
        %v638 = vpop.f32.mrb[0].mxu0
        %639 = vmatprep.mubr.f32.mxu0 0.0
        %640 = vmatmul.mubr.f32.gmra.mrb[0].mxu0 %v544
        %v641 = vpop.f32.mrb[0].mxu0
        %v642 = vadd.f32 0.5, %v641
        %v643 = vpop.f32.mrb[0].mxu0
        %644 = vmatprep.mubr.f32.mxu0 0.0
        %645 = vmatmul.mubr.f32.gmra.mrb[0].mxu0 %v547
        %v646 = vpop.f32.mrb[0].mxu0
        %v647 = vadd.f32 0.5, %v646
        %v648 = vpop.f32.mrb[0].mxu0
        %649 = vmatprep.mubr.f32.mxu0 0.0
        %650 = vmatmul.mubr.f32.gmra.mrb[0].mxu0 %v550
        %v651 = vpop.f32.mrb[0].mxu0
        %v652 = vadd.f32 0.5, %v651
        %v653 = vpop.f32.mrb[0].mxu0
        %654 = vmatprep.mubr.f32.mxu0 0.0
        %655 = vmatmul.mubr.f32.gmra.mrb[0].mxu0 %v553
        %v656 = vpop.f32.mrb[0].mxu0
        %v657 = vadd.f32 0.5, %v656
        %v658 = vpop.f32.mrb[0].mxu0
        %659 = vdwg.mxu0
        %v660 = vfloor.f32 %v622
        %v661 = vfloor.f32 %v627
        %v662 = vfloor.f32 %v632
        %v663 = vfloor.f32 %v637
        %v664 = vfloor.f32 %v642
        %v665 = vfloor.f32 %v647
        %v666 = vfloor.f32 %v652
        %v667 = vfloor.f32 %v657
        %668 = vxpose.xlu0.b32.start [1/16] %v660, 128
        %669 = vxpose.xlu0.b32.cont [2/16] %v661, 128
        %670 = vxpose.xlu0.b32.cont [3/16] 0.0, 128
        %671 = vxpose.xlu0.b32.cont [4/16] 0.0, 128
        %672 = vxpose.xlu0.b32.cont [5/16] 0.0, 128
        %673 = vxpose.xlu0.b32.cont [6/16] 0.0, 128
        %674 = vxpose.xlu0.b32.cont [7/16] 0.0, 128
        %675 = vxpose.xlu0.b32.cont [8/16] 0.0, 128
        %676 = vxpose.xlu0.b32.cont [9/16] 0.0, 128
        %677 = vxpose.xlu0.b32.cont [10/16] 0.0, 128
        %678 = vxpose.xlu0.b32.cont [11/16] 0.0, 128
        %679 = vxpose.xlu0.b32.cont [12/16] 0.0, 128
        %680 = vxpose.xlu0.b32.cont [13/16] 0.0, 128
        %681 = vxpose.xlu0.b32.cont [14/16] 0.0, 128
        %682 = vxpose.xlu0.b32.cont [15/16] 0.0, 128
        %683 = vxpose.xlu0.b32.end [16/16] 0.0, 128
        %v684 = vpop.trf.xlu0
        %v685 = vpop.trf.xlu0
        %v686 = vpop.trf.xlu0
        %v687 = vpop.trf.xlu0
        %v688 = vpop.trf.xlu0
        %v689 = vpop.trf.xlu0
        %v690 = vpop.trf.xlu0
        %v691 = vpop.trf.xlu0
        %v692 = vpop.trf.xlu0
        %v693 = vpop.trf.xlu0
        %v694 = vpop.trf.xlu0
        %v695 = vpop.trf.xlu0
        %v696 = vpop.trf.xlu0
        %v697 = vpop.trf.xlu0
        %v698 = vpop.trf.xlu0
        %v699 = vpop.trf.xlu0
        %700 = vxpose.xlu0.b32.start [1/16] %v662, 128
        %701 = vxpose.xlu0.b32.cont [2/16] %v663, 128
        %702 = vxpose.xlu0.b32.cont [3/16] 0.0, 128
        %703 = vxpose.xlu0.b32.cont [4/16] 0.0, 128
        %704 = vxpose.xlu0.b32.cont [5/16] 0.0, 128
        %705 = vxpose.xlu0.b32.cont [6/16] 0.0, 128
        %706 = vxpose.xlu0.b32.cont [7/16] 0.0, 128
        %707 = vxpose.xlu0.b32.cont [8/16] 0.0, 128
        %708 = vxpose.xlu0.b32.cont [9/16] 0.0, 128
        %709 = vxpose.xlu0.b32.cont [10/16] 0.0, 128
        %710 = vxpose.xlu0.b32.cont [11/16] 0.0, 128
        %711 = vxpose.xlu0.b32.cont [12/16] 0.0, 128
        %712 = vxpose.xlu0.b32.cont [13/16] 0.0, 128
        %713 = vxpose.xlu0.b32.cont [14/16] 0.0, 128
        %714 = vxpose.xlu0.b32.cont [15/16] 0.0, 128
        %715 = vxpose.xlu0.b32.end [16/16] 0.0, 128
        %v716 = vpop.trf.xlu0
        %v717 = vpop.trf.xlu0
        %v718 = vpop.trf.xlu0
        %v719 = vpop.trf.xlu0
        %v720 = vpop.trf.xlu0
        %v721 = vpop.trf.xlu0
        %v722 = vpop.trf.xlu0
        %v723 = vpop.trf.xlu0
        %v724 = vpop.trf.xlu0
        %v725 = vpop.trf.xlu0
        %v726 = vpop.trf.xlu0
        %v727 = vpop.trf.xlu0
        %v728 = vpop.trf.xlu0
        %v729 = vpop.trf.xlu0
        %v730 = vpop.trf.xlu0
        %v731 = vpop.trf.xlu0
        %732 = vxpose.xlu0.b32.start [1/16] %v664, 128
        %733 = vxpose.xlu0.b32.cont [2/16] %v665, 128
        %734 = vxpose.xlu0.b32.cont [3/16] 0.0, 128
        %735 = vxpose.xlu0.b32.cont [4/16] 0.0, 128
        %736 = vxpose.xlu0.b32.cont [5/16] 0.0, 128
        %737 = vxpose.xlu0.b32.cont [6/16] 0.0, 128
        %738 = vxpose.xlu0.b32.cont [7/16] 0.0, 128
        %739 = vxpose.xlu0.b32.cont [8/16] 0.0, 128
        %740 = vxpose.xlu0.b32.cont [9/16] 0.0, 128
        %741 = vxpose.xlu0.b32.cont [10/16] 0.0, 128
        %742 = vxpose.xlu0.b32.cont [11/16] 0.0, 128
        %743 = vxpose.xlu0.b32.cont [12/16] 0.0, 128
        %744 = vxpose.xlu0.b32.cont [13/16] 0.0, 128
        %745 = vxpose.xlu0.b32.cont [14/16] 0.0, 128
        %746 = vxpose.xlu0.b32.cont [15/16] 0.0, 128
        %747 = vxpose.xlu0.b32.end [16/16] 0.0, 128
        %v748 = vpop.trf.xlu0
        %v749 = vpop.trf.xlu0
        %v750 = vpop.trf.xlu0
        %v751 = vpop.trf.xlu0
        %v752 = vpop.trf.xlu0
        %v753 = vpop.trf.xlu0
        %v754 = vpop.trf.xlu0
        %v755 = vpop.trf.xlu0
        %v756 = vpop.trf.xlu0
        %v757 = vpop.trf.xlu0
        %v758 = vpop.trf.xlu0
        %v759 = vpop.trf.xlu0
        %v760 = vpop.trf.xlu0
        %v761 = vpop.trf.xlu0
        %v762 = vpop.trf.xlu0
        %v763 = vpop.trf.xlu0
        %764 = vxpose.xlu0.b32.start [1/16] %v666, 128
        %765 = vxpose.xlu0.b32.cont [2/16] %v667, 128
        %766 = vxpose.xlu0.b32.cont [3/16] 0.0, 128
        %767 = vxpose.xlu0.b32.cont [4/16] 0.0, 128
        %768 = vxpose.xlu0.b32.cont [5/16] 0.0, 128
        %769 = vxpose.xlu0.b32.cont [6/16] 0.0, 128
        %770 = vxpose.xlu0.b32.cont [7/16] 0.0, 128
        %771 = vxpose.xlu0.b32.cont [8/16] 0.0, 128
        %772 = vxpose.xlu0.b32.cont [9/16] 0.0, 128
        %773 = vxpose.xlu0.b32.cont [10/16] 0.0, 128
        %774 = vxpose.xlu0.b32.cont [11/16] 0.0, 128
        %775 = vxpose.xlu0.b32.cont [12/16] 0.0, 128
        %776 = vxpose.xlu0.b32.cont [13/16] 0.0, 128
        %777 = vxpose.xlu0.b32.cont [14/16] 0.0, 128
        %778 = vxpose.xlu0.b32.cont [15/16] 0.0, 128
        %779 = vxpose.xlu0.b32.end [16/16] 0.0, 128
        %v780 = vpop.trf.xlu0
        %v781 = vpop.trf.xlu0
        %v782 = vpop.trf.xlu0
        %v783 = vpop.trf.xlu0
        %v784 = vpop.trf.xlu0
        %v785 = vpop.trf.xlu0
        %v786 = vpop.trf.xlu0
        %v787 = vpop.trf.xlu0
        %v788 = vpop.trf.xlu0
        %v789 = vpop.trf.xlu0
        %v790 = vpop.trf.xlu0
        %v791 = vpop.trf.xlu0
        %v792 = vpop.trf.xlu0
        %v793 = vpop.trf.xlu0
        %v794 = vpop.trf.xlu0
        %v795 = vpop.trf.xlu0
        %v796 = vmul.f32 %v684, 0.003921569
        %v797 = vmul.f32 %v685, 0.003921569
        %v798 = vmul.f32 %v716, 0.003921569
        %v799 = vmul.f32 %v717, 0.003921569
        %v800 = vmul.f32 %v748, 0.003921569
        %v801 = vmul.f32 %v749, 0.003921569
        %v802 = vmul.f32 %v780, 0.003921569
        %v803 = vmul.f32 %v781, 0.003921569
        %804 = vst.msk [vmem:[%s218] sm:$0xff] %vm263, %v796
        %805 = vst.msk [vmem:[%s218 + $0x8] sm:$0xff] %vm263, %v797
        %806 = vst.msk [vmem:[%s218 + $0x10] sm:$0xff] %vm263, %v798
        %807 = vst.msk [vmem:[%s218 + $0x18] sm:$0xff] %vm263, %v799
        %808 = vst.msk [vmem:[%s218 + $0x20] sm:$0xff] %vm263, %v800
        %809 = vst.msk [vmem:[%s218 + $0x28] sm:$0xff] %vm263, %v801
        %810 = vst.msk [vmem:[%s218 + $0x30] sm:$0xff] %vm263, %v802
        %811 = vst.msk [vmem:[%s218 + $0x38] sm:$0xff] %vm263, %v803
        %s812 = sand.u32 %s97, 1
        %s813 = scalar_lea.sflag [#allocation4], %s812
        %s814 = sand.u32 %s97, 1
        %s815 = smul.addr %s814, 64
        %s816 = scalar_lea.vmem [#allocation8], %s815
        // Predicated region
        $region45: #{tpu_custom_call.1} parent=31 // pred_check
          %p817 = pneg %p107
        $region46: #{tpu_custom_call.1} parent=31 // pred_check_branch
          %819 = sbr.rel (%p817) target = $region48
        $region47: #{tpu_custom_call.1} parent=31 // pred_region
          %s820 = smul.u32 4, %s21
          %s822 = ssub.s32 1024, 1024
          %823 = vsyncadd %s813, %s822
          %s824 = smul.addr %s820, 2
          %s825 = smul.addr %s824, 128
          %s826 = scalar_lea.hbm %s3, %s825
          %s827 = sshll.u32 %s816, 4
          %s828 = int_to_ptr.vmem [resolvable:$true] %s827
          %833 = dma.vmem_to_hbm [thread:$0]  %s828, 1024, %s826, %s813, 128, 128, 8
        $region48: #{tpu_custom_call.1} parent=31 // pred_fallthru
          _
      $region32: #{tpu_custom_call.1} parent=5 // pred_fallthru
        _
      %p834 = scmp.le.s32.totalorder 2, %s16
      // Predicated region
      $region49: #{tpu_custom_call.1} parent=5 // pred_check
        %p835 = pneg %p834
      $region50: #{tpu_custom_call.1} parent=5 // pred_check_branch
        %837 = sbr.rel (%p835) target = $region52
      $region51: #{tpu_custom_call.1} parent=5 // pred_region
        %s838 = ssub.s32 %s16, 2
        // Predicated region
        $region53: #{tpu_custom_call.1} parent=51 // pred_check
          %p839 = pneg %p113
        $region54: #{tpu_custom_call.1} parent=51 // pred_check_branch
          %841 = sbr.rel (%p839) target = $region56
        $region55: #{tpu_custom_call.1} parent=51 // pred_region
          %s842 = sand.u32 %s98, 1
          %s843 = scalar_lea.sflag [#allocation4], %s842
          %s844 = sand.u32 %s98, 1
          %s845 = smul.addr %s844, 64
          %s846 = scalar_lea.vmem [#allocation8], %s845
          %847 = dma.done %s843, 1024
        $region56: #{tpu_custom_call.1} parent=51 // pred_fallthru
          _
      $region52: #{tpu_custom_call.1} parent=5 // pred_fallthru
        _
    $region6: #{tpu_custom_call.1} parent=1 // loop_footer
      %s20 = sadd.s32 1, %s16
    $region7: #{tpu_custom_call.1} parent=1 // loop_footer_branch
      %15 = sbr.rel target = $region3
    $region8: #{tpu_custom_call.1} parent=1 // loop_exit
      _
    %848 = vsyncpa [#allocation3], 1
    %s849 = scalar_lea.sflag [#allocation3], 1
    %850 = vsyncpa %s849, 1
    %851 = vsyncpa [#allocation6], 1
    %852 = vsyncpa [#allocation4], 1
    %s853 = scalar_lea.sflag [#allocation4], 1
    %854 = vsyncpa %s853, 1

</llo_original>
